<compile_context>
chip_gen: v7x
topology: tpu7x:2x2x1
jax: 0.10.0
libtpu: 0.0.40
codegen_flags: <defaults>
</compile_context>

<pallas_src>
import functools

import numpy as np
import jax
import jax.numpy as jnp
from jax.experimental import pallas as pl
from jax.experimental.pallas import tpu as pltpu

EPS = 1e-5


def _fold_bn(w2d, gamma, beta, mean, var):
    """Fold eval-mode BatchNorm into a preceding bias-free conv weight."""
    scale = np.asarray(gamma, np.float32) / np.sqrt(np.asarray(var, np.float32) + EPS)
    w_f = scale[:, None] * np.asarray(w2d, np.float32)
    b_f = np.asarray(beta, np.float32) - scale * np.asarray(mean, np.float32)
    return w_f, b_f


@functools.lru_cache(maxsize=None)
def _roll_is_numpy_convention():
    """One-time on-device probe of pltpu.roll's shift sign.

    Returns True iff pltpu.roll(x, shift)[i] == x[(i - shift) % n] (np.roll
    convention).  Keeps the tap construction correct even if the rotate
    primitive's direction convention differs across jax versions."""
    def k(x_ref, o_ref):
        o_ref[...] = pltpu.roll(x_ref[...], shift=1, axis=1)

    x = jnp.asarray(np.tile(np.arange(128, dtype=np.float32), (8, 1)))
    out = np.asarray(pl.pallas_call(
        k, out_shape=jax.ShapeDtypeStruct((8, 128), jnp.float32))(x))
    first = float(out[0, 0])
    if first == 127.0:     # result[0] == x[-1]  -> np.roll convention
        return True
    if first == 1.0:       # result[0] == x[+1]  -> opposite convention
        return False
    raise RuntimeError(f"unexpected pltpu.roll behaviour (out[0,0]={first})")


def _make_kernel(shifts):
    """shifts: 9 static lane-rotation amounts (sign-adjusted, in [0, P))."""

    def kernel(x_ref, w1_ref, b1_ref, mask_ref, w2_ref, b2_ref, w3_ref, b3_ref,
               wf1_ref, bf1_ref, wf2_ref, bf2_ref, o_ref):
        cdt = w1_ref.dtype                     # MXU operand dtype (bf16 or f32)
        x = x_ref[0]                           # (C, P) f32; also the identity

        # conv1 (1x1) + bn1 + relu  (BN folded into w1/b1)
        u = jnp.dot(w1_ref[...], x.astype(cdt),
                    preferred_element_type=jnp.float32) + b1_ref[...]
        u = jnp.maximum(u, 0.0)                # (width, P) f32

        # Res2Net 3x3 stage: per tap, lane-rotate the slab (XLU) and zero the
        # out-of-image positions (0/1 mask, VPU); stack the 9 taps along the
        # sublane axis and run ONE K=9*width channel-mixing matmul on the MXU
        # (BN scale folded in, block-diagonal over the `scale` groups).
        taps = []
        for k, sh in enumerate(shifts):
            if sh == 0:                        # centre tap: no shift, mask == 1
                taps.append(u.astype(cdt))
            else:
                taps.append(
                    (pltpu.roll(u, shift=sh, axis=1) * mask_ref[k]).astype(cdt))
        stacked = jnp.concatenate(taps, axis=0)                 # (9*width, P)
        branches = jnp.maximum(
            jnp.dot(w2_ref[...], stacked, preferred_element_type=jnp.float32)
            + b2_ref[...], 0.0)                                 # (width, P)

        # conv3 (1x1) + bn3, with the cascaded-sum matrix pre-folded into W3.
        v = jnp.dot(w3_ref[...], branches.astype(cdt),
                    preferred_element_type=jnp.float32) + b3_ref[...]   # (C, P)

        # SE block (channel attention), f32 matvecs (negligible MXU work).
        m = jnp.mean(v, axis=1, keepdims=True)                  # (C, 1)
        h = jnp.maximum(
            jnp.dot(wf1_ref[...], m, preferred_element_type=jnp.float32)
            + bf1_ref[...], 0.0)
        s = jax.nn.sigmoid(
            jnp.dot(wf2_ref[...], h, preferred_element_type=jnp.float32)
            + bf2_ref[...])

        # scale, residual add (downsample=None -> identity = x), final relu
        o_ref[0] = jnp.maximum(v * s + x, 0.0).astype(o_ref.dtype)

    return kernel


def bottleneck_v2_pallas(x, params, scale=4, se_reduces=16,
                         compute_dtype=jnp.bfloat16):
    """Fused BottleneckV2 forward (eval-mode BN).  `compute_dtype` controls the
    MXU operand precision (bf16 default; jnp.float32 for an exact f32 path)."""
    N, C_in, H, W_img = x.shape
    P = H * W_img

    W1 = np.asarray(params["W1"], np.float32)            # (width, C_in)
    width = W1.shape[0]
    esp = width // scale
    W3 = np.asarray(params["W3"], np.float32)            # (C_out, width)
    C_out = W3.shape[0]
    hid = C_out // se_reduces
    assert C_in == C_out, "identity add requires inplanes == planes*expansion"
    # TODO(synk): downsample / stride>1 / dilation>1 / groups>1 paths are not
    # implemented (module defaults: stride=1, downsample=None, groups=1, dilation=1).

    g1, be1, m1, v1 = [np.asarray(a, np.float32) for a in params["bn1"]]
    g2, be2, m2, v2 = [np.asarray(a, np.float32) for a in params["bn2"]]
    g3, be3, m3, v3 = [np.asarray(a, np.float32) for a in params["bn3"]]
    W2 = np.asarray(params["W2"], np.float32)            # (scale, esp, esp, 3, 3)

    # ---- host-side weight folding (pure glue, no activation traffic) ----
    w1f, b1f = _fold_bn(W1, g1, be1, m1, v1)
    w3f, b3f = _fold_bn(W3, g3, be3, m3, v3)

    # conv2: per-tap block-diagonal weights (BN scale folded) concatenated
    # along K -> one (width, 9*width) operand for a single MXU contraction.
    w2cat = np.zeros((width, 9 * width), np.float32)
    b2f = np.zeros((width,), np.float32)
    for g in range(scale):
        sl = slice(g * esp, (g + 1) * esp)
        sc2 = g2[g] / np.sqrt(v2[g] + EPS)
        b2f[sl] = be2[g] - sc2 * m2[g]
        for ky in range(3):
            for kx in range(3):
                k = ky * 3 + kx
                w2cat[sl, k * width + g * esp:k * width + (g + 1) * esp] = (
                    sc2[:, None] * W2[g, :, :, ky, kx])

    # Res2Net cascaded sum result[g] = sum_{j<=g} branch[j]: fold the 0/1
    # lower-block-triangular matrix into conv3 on the host (exact).
    cum = np.kron(np.tril(np.ones((scale, scale), np.float32)),
                  np.eye(esp, dtype=np.float32))          # (width, width)
    w3cum = w3f @ cum                                     # (C_out, width)

    # 3x3 tap spatial shifts (lane rotations of the flattened H*W axis) and
    # 0/1 in-image validity masks (replaces the old (9, P, P) shift matrices).
    np_conv = _roll_is_numpy_convention()
    shifts = []
    masks = np.zeros((9, 1, P), np.float32)
    rr = np.arange(H)[:, None]
    cc = np.arange(W_img)[None, :]
    for ky in range(3):
        for kx in range(3):
            k = ky * 3 + kx
            dy, dx = ky - 1, kx - 1
            s = dy * W_img + dx                  # want tap[p] = u[p + s] (masked)
            shifts.append(int((-s) % P) if np_conv else int(s % P))
            valid = ((rr + dy >= 0) & (rr + dy < H) &
                     (cc + dx >= 0) & (cc + dx < W_img))
            masks[k, 0] = valid.astype(np.float32).reshape(P)

    wf1 = np.asarray(params["Wf1"], np.float32)           # (hid, C_out)
    bf1 = np.asarray(params["bf1"], np.float32).reshape(hid, 1)
    wf2 = np.asarray(params["Wf2"], np.float32)           # (C_out, hid)
    bf2 = np.asarray(params["bf2"], np.float32).reshape(C_out, 1)

    x_flat = x.reshape(N, C_in, P)                        # free contiguous reshape
    # TODO(synk): if the surrounding network runs bf16, accept/emit bf16
    # activations here to halve the (now dominant) HBM traffic on x / out.
    # TODO(synk): process several batch items per grid step ((C, B*P) lanes)
    # once a cheap in-kernel (B,C,P)->(C,B*P) relayout is worthwhile.

    kernel = _make_kernel(tuple(shifts))
    cdt = compute_dtype

    out_flat = pl.pallas_call(
        kernel,
        out_shape=jax.ShapeDtypeStruct((N, C_out, P), jnp.float32),
        grid=(N,),
        in_specs=[
            pl.BlockSpec((1, C_in, P), lambda n: (n, 0, 0)),        # x (and identity)
            pl.BlockSpec((width, C_in), lambda n: (0, 0)),          # conv1+bn1 folded
            pl.BlockSpec((width, 1), lambda n: (0, 0)),             # b1 folded
            pl.BlockSpec((9, 1, P), lambda n: (0, 0, 0)),           # tap boundary masks
            pl.BlockSpec((width, 9 * width), lambda n: (0, 0)),     # conv2+bn2 folded (K-concat)
            pl.BlockSpec((width, 1), lambda n: (0, 0)),             # b2 folded
            pl.BlockSpec((C_out, width), lambda n: (0, 0)),         # (conv3+bn3) @ cum folded
            pl.BlockSpec((C_out, 1), lambda n: (0, 0)),             # b3 folded
            pl.BlockSpec((hid, C_out), lambda n: (0, 0)),           # SE fc1 weight
            pl.BlockSpec((hid, 1), lambda n: (0, 0)),               # SE fc1 bias
            pl.BlockSpec((C_out, hid), lambda n: (0, 0)),           # SE fc2 weight
            pl.BlockSpec((C_out, 1), lambda n: (0, 0)),             # SE fc2 bias
        ],
        out_specs=pl.BlockSpec((1, C_out, P), lambda n: (n, 0, 0)),
        compiler_params=pltpu.CompilerParams(
            dimension_semantics=("parallel",)),   # batch items independent (v7x 2-TC)
    )(x_flat,
      jnp.asarray(w1f, cdt), jnp.asarray(b1f.reshape(width, 1)),
      jnp.asarray(masks),
      jnp.asarray(w2cat, cdt), jnp.asarray(b2f.reshape(width, 1)),
      jnp.asarray(w3cum, cdt), jnp.asarray(b3f.reshape(C_out, 1)),
      jnp.asarray(wf1), jnp.asarray(bf1), jnp.asarray(wf2), jnp.asarray(bf2))
    return out_flat.reshape(N, C_out, H, W_img)


def reference(x, params, scale=4, se_reduces=16):
    """Independent NumPy reference matching the PyTorch forward (eval-mode BN)."""
    x = np.asarray(x, np.float64)
    N, C_in, H, W = x.shape
    W1 = np.asarray(params["W1"], np.float64)
    W2 = np.asarray(params["W2"], np.float64)
    W3 = np.asarray(params["W3"], np.float64)
    g1, be1, m1, v1 = [np.asarray(a, np.float64) for a in params["bn1"]]
    g2, be2, m2, v2 = [np.asarray(a, np.float64) for a in params["bn2"]]
    g3, be3, m3, v3 = [np.asarray(a, np.float64) for a in params["bn3"]]
    Wf1 = np.asarray(params["Wf1"], np.float64)
    bf1 = np.asarray(params["bf1"], np.float64)
    Wf2 = np.asarray(params["Wf2"], np.float64)
    bf2 = np.asarray(params["bf2"], np.float64)
    width = W1.shape[0]
    esp = width // scale

    def bn(y, g, b, m, v):
        return ((y - m[:, None, None]) / np.sqrt(v[:, None, None] + EPS)
                * g[:, None, None] + b[:, None, None])

    def conv1x1(y, w):
        return np.einsum('oc,chw->ohw', w, y)

    def conv3x3(y, w):
        Hh, Ww = y.shape[1:]
        yp = np.pad(y, ((0, 0), (1, 1), (1, 1)))
        out = np.zeros((w.shape[0], Hh, Ww))
        for dy in range(3):
            for dx in range(3):
                out += np.einsum('oc,chw->ohw', w[:, :, dy, dx],
                                 yp[:, dy:dy + Hh, dx:dx + Ww])
        return out

    outs = []
    for n in range(N):
        xi = x[n]
        u = np.maximum(bn(conv1x1(xi, W1), g1, be1, m1, v1), 0.0)
        res = []
        for g in range(scale):
            xg = u[g * esp:(g + 1) * esp]
            bg = np.maximum(bn(conv3x3(xg, W2[g]), g2[g], be2[g], m2[g], v2[g]), 0.0)
            if g > 0:
                bg = bg + res[g - 1]
            res.append(bg)
        cat = np.concatenate(res, axis=0)
        v = bn(conv1x1(cat, W3), g3, be3, m3, v3)
        mean = v.mean(axis=(1, 2))
        h = np.maximum(Wf1 @ mean + bf1, 0.0)
        s = 1.0 / (1.0 + np.exp(-(Wf2 @ h + bf2)))
        outs.append(np.maximum(v * s[:, None, None] + xi, 0.0))
    return np.stack(outs)


if __name__ == "__main__":
    # Shapes implied by the module: inplanes = planes*expansion (identity add,
    # downsample=None), scale=4 -> width=planes, each_scale_planes=width//4,
    # SeBlock reduces=16 -> hidden = 4*planes // 16.
    N, H, W = 2, 16, 16
    planes, scale, se_reduces = 16, 4, 16
    width = planes                      # base_width=64, groups=1
    esp = width // scale
    C = planes * 4                      # inplanes == output channels == 64
    hid = C // se_reduces

    key = jax.random.PRNGKey(0)
    ks = jax.random.split(key, 12)
    norm = lambda k, shp, s=0.3: jax.random.normal(k, shp, jnp.float32) * s

    def bn_params(k, shp):
        k1, k2, k3, k4 = jax.random.split(k, 4)
        gamma = 1.0 + 0.1 * jax.random.normal(k1, shp, jnp.float32)
        beta = 0.1 * jax.random.normal(k2, shp, jnp.float32)
        mean = 0.1 * jax.random.normal(k3, shp, jnp.float32)
        var = jax.random.uniform(k4, shp, jnp.float32, 0.5, 1.5)
        return (gamma, beta, mean, var)

    params = {
        "W1": norm(ks[0], (width, C)),
        "bn1": bn_params(ks[1], (width,)),
        "W2": norm(ks[2], (scale, esp, esp, 3, 3)),
        "bn2": bn_params(ks[3], (scale, esp)),
        "W3": norm(ks[4], (C, width)),
        "bn3": bn_params(ks[5], (C,)),
        "Wf1": norm(ks[6], (hid, C)),
        "bf1": norm(ks[7], (hid,), 0.1),
        "Wf2": norm(ks[8], (C, hid)),
        "bf2": norm(ks[9], (C,), 0.1),
    }
    x = jax.random.normal(ks[10], (N, C, H, W), jnp.float32)

    ref = reference(x, params, scale=scale, se_reduces=se_reduces)

    # Strict check: f32 compute path must match the reference tightly.
    out_f32 = bottleneck_v2_pallas(x, params, scale=scale, se_reduces=se_reduces,
                                   compute_dtype=jnp.float32)
    out_f32 = jax.block_until_ready(out_f32)
    np.testing.assert_allclose(np.asarray(out_f32), ref, rtol=2e-3, atol=2e-3)

    # Fast path: bf16 MXU operands with f32 accumulation (default).  Looser
    # check that still catches any structural error (those are O(1) off).
    out_bf16 = bottleneck_v2_pallas(x, params, scale=scale, se_reduces=se_reduces,
                                    compute_dtype=jnp.bfloat16)
    out_bf16 = jax.block_until_ready(out_bf16)
    err = float(np.max(np.abs(np.asarray(out_bf16) - ref)))
    ref_scale = max(1.0, float(np.max(np.abs(ref))))
    assert err <= 0.05 * ref_scale, (
        f"bf16 compute path deviates too much: max|err|={err:.4f}, "
        f"ref scale={ref_scale:.2f}")

    print("KERNEL_OK")
</pallas_src>

<mosaic_0001>
module attributes {stable_mosaic.version = 11 : i64} {
  func.func @k(%arg0: memref<8x128xf32, #tpu.memory_space<vmem>>, %arg1: memref<8x128xf32, #tpu.memory_space<vmem>>) attributes {dimension_semantics = [], scalar_prefetch = 0 : i64, scratch_operands = 0 : i64, tpu.core_type = #tpu.core_type<tc>} {
    %c0 = arith.constant 0 : index
    %c0_0 = arith.constant 0 : index
    %0 = vector.load %arg0[%c0, %c0_0] : memref<8x128xf32, #tpu.memory_space<vmem>>, vector<8x128xf32>
    %c1_i32 = arith.constant 1 : i32
    %1 = tpu.dynamic_rotate %0 by %c1_i32 dim 1 : vector<8x128xf32>, i32 -> vector<8x128xf32>
    %c0_1 = arith.constant 0 : index
    %c0_2 = arith.constant 0 : index
    %2 = vector.load %arg1[%c0_1, %c0_2] : memref<8x128xf32, #tpu.memory_space<vmem>>, vector<8x128xf32>
    tpu.vector_store %arg1[%c0_1, %c0_2], %1 {strides = array<i32>} : memref<8x128xf32, #tpu.memory_space<vmem>>, vector<8x128xf32>,
    return
  }
}

</mosaic_0001>

<llo_original>
// kernel: tpu_custom_call.1
$region0: #{tpu_custom_call.1}
  #allocation0 [shape = 'u32[]', space=smem, size = 0x4, offset = 0x4, fixed_abs, tag = 'smem constant byte address 0x4 - core index']
  #allocation1 [shape = 'u32[144,128]{1,0:T(1,128)}', space=vmem, size = 0x12000, scoped, tag = 'internal scratch']
  %s0 = inlined_call_operand.hbm [shape: f32[8,128], index: 0, kind: input, shape index: {}]
  %s1 = inlined_call_operand.hbm [shape: f32[8,128], index: 1, kind: output, shape index: {}]
  %s2 = sld [smem:[#allocation0]]
  $region18: #{tpu_custom_call.1} parent=0
    _
  %s4 = ssub.s32 1, %s2
  %s5 = scalar_select 0, %s4, %s2
  $region1: #{tpu_custom_call.1} parent=0
    #allocation2 [shape = 'u8[4096]{0}', space=vmem, size = 0x1000, scoped, tag = 'input window, operand 0, single buffered']
    #allocation3 [shape = 's32[1]{0}', space=sflag, size = 0x4, scoped, tag = 'scoped memory for tpu_custom_call.1']
    #allocation4 [shape = 's32[1]{0}', space=sflag, size = 0x4, scoped, tag = 'scoped memory for tpu_custom_call.1']
    #allocation5 [shape = 'u8[4096]{0}', space=vmem, size = 0x1000, scoped, tag = 'output window, operand 0, single buffered']
    %6 = vsyncpa [#allocation3], 0
    %7 = vsyncpa [#allocation4], 0
    // Predicated region
    $region2: #{tpu_custom_call.1} parent=1 // pred_check
      _
    $region3: #{tpu_custom_call.1} parent=1 // pred_check_branch
      %9 = sbr.rel (0) target = $region5
    $region4: #{tpu_custom_call.1} parent=1 // pred_region
      %s11 = ssub.s32 128, 128
      %12 = vsyncadd [#allocation3], %s11
      %s14 = sshll.u32 [#allocation2], 4
      %s15 = int_to_ptr.vmem [resolvable:$true] %s14
      %17 = dma.hbm_to_vmem [thread:$0]  %s0, 128, %s15, [#allocation3]
    $region5: #{tpu_custom_call.1} parent=1 // pred_fallthru
      _
    // Predicated region
    $region6: #{tpu_custom_call.1} parent=1 // pred_check
      _
    $region7: #{tpu_custom_call.1} parent=1 // pred_check_branch
      %19 = sbr.rel (0) target = $region9
    $region8: #{tpu_custom_call.1} parent=1 // pred_region
      %20 = dma.done [#allocation3], 128
    $region9: #{tpu_custom_call.1} parent=1 // pred_fallthru
      _
    %v21 = vld [vmem:[#allocation2] sm:$0xff]
    %22 = vrot.lane.b32.xlu0 %v21, 1
    %v23 = vpop.permute.xlu0 %22
    %24 = vst [vmem:[#allocation5] sm:$0xff] %v23
    // Predicated region
    $region10: #{tpu_custom_call.1} parent=1 // pred_check
      _
    $region11: #{tpu_custom_call.1} parent=1 // pred_check_branch
      %26 = sbr.rel (0) target = $region13
    $region12: #{tpu_custom_call.1} parent=1 // pred_region
      %s28 = ssub.s32 128, 128
      %29 = vsyncadd [#allocation4], %s28
      %s31 = sshll.u32 [#allocation5], 4
      %s32 = int_to_ptr.vmem [resolvable:$true] %s31
      %34 = dma.vmem_to_hbm [thread:$0]  %s32, 128, %s1, [#allocation4]
    $region13: #{tpu_custom_call.1} parent=1 // pred_fallthru
      _
    // Predicated region
    $region14: #{tpu_custom_call.1} parent=1 // pred_check
      _
    $region15: #{tpu_custom_call.1} parent=1 // pred_check_branch
      %36 = sbr.rel (0) target = $region17
    $region16: #{tpu_custom_call.1} parent=1 // pred_region
      %37 = dma.done [#allocation4], 128
    $region17: #{tpu_custom_call.1} parent=1 // pred_fallthru
      _
    %38 = vsyncpa [#allocation3], 1
    %39 = vsyncpa [#allocation4], 1

</llo_original>
